<compile_context>
chip_gen: v7x
topology: tpu7x:2x2x1
jax: 0.10.0
libtpu: 0.0.40
codegen_flags: <defaults>
</compile_context>

<pallas_src>
import jax
import jax.numpy as jnp
import numpy as np
from jax.experimental import pallas as pl
from jax.experimental.pallas import tpu as pltpu


def _round_up(v, m):
    return ((v + m - 1) // m) * m


# ------- stage 1: conv1-3 (BN scale folded into weights) + running max ------

def conv_pool_kernel(x_ref, w1_ref, b1_ref, w2_ref, b2_ref, w3_ref,
                     pooled_ref):
    n = pl.program_id(2)
    x = x_ref[0]                                              # (tn, 3) f32

    # conv1 (K=3) on the VPU as broadcast FMAs (too narrow for the MXU).
    # TODO(synk): an NCW (1,3,tn) input block would avoid the 3->128 lane
    # padding of this tile; at tn<=1024 the ~1 MB VMEM cost is acceptable.
    h = (x[:, 0:1] * w1_ref[0:1, :]
         + x[:, 1:2] * w1_ref[1:2, :]
         + x[:, 2:3] * w1_ref[2:3, :])                        # (tn, 64)
    h = jnp.maximum(h + b1_ref[...], 0.0)

    # conv2 + bias + relu (bf16 inputs, f32 accumulation).
    h = jnp.dot(h.astype(jnp.bfloat16), w2_ref[...],
                preferred_element_type=jnp.float32)           # (tn, 128)
    h = jnp.maximum(h + b2_ref[...], 0.0)

    # conv3 raw pre-activation (bn3 scale folded into w3; bias + ReLU are
    # hoisted past the max and applied once in stage 2 -- exact, monotone).
    h = jnp.dot(h.astype(jnp.bfloat16), w3_ref[...],
                preferred_element_type=jnp.float32)           # (tn, 1024)

    tile_max = jnp.max(h, axis=0, keepdims=True)              # (1, 1024)

    @pl.when(n == 0)
    def _():
        pooled_ref[0] = tile_max

    @pl.when(n > 0)
    def _():
        pooled_ref[0] = jnp.maximum(pooled_ref[0], tile_max)


# --------------- stage 2: fc1/fc2/fc3 batched over pooled rows --------------

def fc_kernel(p_ref, b3_ref, wf1_ref, b4_ref, wf2_ref, b5_ref,
              wf3_ref, bf3_ref, out_ref):
    # Hoisted bn3 bias + ReLU (once per pooled row instead of once per point).
    p = jnp.maximum(p_ref[...] + b3_ref[...], 0.0)            # (bb, 1024)
    f = jnp.dot(p.astype(jnp.bfloat16), wf1_ref[...],
                preferred_element_type=jnp.float32)           # (bb, 512)
    f = jnp.maximum(f + b4_ref[...], 0.0)
    f = jnp.dot(f.astype(jnp.bfloat16), wf2_ref[...],
                preferred_element_type=jnp.float32)           # (bb, 256)
    f = jnp.maximum(f + b5_ref[...], 0.0)
    # fc3: lane-padded (256,128) bf16 weight; 3x3 identity folded into bias.
    out_ref[...] = (jnp.dot(f.astype(jnp.bfloat16), wf3_ref[...],
                            preferred_element_type=jnp.float32)
                    + bf3_ref[...])                           # (bb, 128)


def stn3d_forward(x_ncw, params, *, tn=None, point_splits=None):
    """x_ncw: (B, 3, N) float32, PyTorch NCW layout.  Returns (B, 3, 3)."""
    B, C, N = x_ncw.shape
    assert C == 3
    x = jnp.transpose(x_ncw, (0, 2, 1)).astype(jnp.float32)   # (B, N, 3)
    eps = 1e-5

    def fold(w, b, gamma, beta, mean, var):
        # bn(x @ w.T + b) == x @ (w.T * scale) + (scale*(b - mean) + beta)
        scale = gamma / jnp.sqrt(var + eps)
        w_f = (w * scale[:, None]).T                          # (in, out)
        bias = scale * (b - mean) + beta
        return w_f.astype(jnp.float32), bias[None, :].astype(jnp.float32)

    w1f, b1 = fold(params["w1"], params["b1"], *params["bn1"])      # (3,64)
    w2f, b2 = fold(params["w2"], params["b2"], *params["bn2"])      # (64,128)
    w3f, b3 = fold(params["w3"], params["b3"], *params["bn3"])      # (128,1024)
    wf1f, b4 = fold(params["wf1"], params["bf1"], *params["bn4"])   # (1024,512)
    wf2f, b5 = fold(params["wf2"], params["bf2"], *params["bn5"])   # (512,256)

    # bf16 matmul weights (f32 accumulation in-kernel).
    w2f = w2f.astype(jnp.bfloat16)
    w3f = w3f.astype(jnp.bfloat16)
    wf1f = wf1f.astype(jnp.bfloat16)
    wf2f = wf2f.astype(jnp.bfloat16)

    # fc3: lane-pad output width 9 -> 128, fold the 3x3 identity into bias.
    iden = jnp.array([1, 0, 0, 0, 1, 0, 0, 0, 1], jnp.float32)
    wf3p = jnp.zeros((256, 128), jnp.float32).at[:, :9].set(params["wf3"].T)
    wf3p = wf3p.astype(jnp.bfloat16)
    bf3p = jnp.zeros((1, 128), jnp.float32).at[0, :9].set(params["bf3"] + iden)

    # ---- stage 1 tiling: tn points per tile + optional parallel point split
    if tn is None:
        tn = min(1024, _round_up(N, 8))
    tn = _round_up(tn, 8)
    n_tiles = -(-N // tn)
    if point_splits is None:
        # Use both TensorCores (v7x) even at tiny batch by splitting the
        # point-reduction into independent partial maxes.
        point_splits = 2 if (B < 4 and n_tiles >= 2) else 1
    point_splits = max(1, min(point_splits, n_tiles))
    N_pad = _round_up(N, tn * point_splits)
    tiles_per_split = N_pad // (tn * point_splits)
    if N_pad != N:
        # Pad with copies of point 0 -> global max unchanged.
        pad = jnp.broadcast_to(x[:, :1, :], (B, N_pad - N, 3))
        x = jnp.concatenate([x, pad], axis=1)

    tps = tiles_per_split
    conv_weights = [w1f, b1, w2f, b2, w3f]
    conv_specs = ([pl.BlockSpec((1, tn, 3),
                                lambda b, s, n: (b, s * tps + n, 0))]
                  + [pl.BlockSpec(w.shape, lambda b, s, n: (0, 0))
                     for w in conv_weights])

    pooled = pl.pallas_call(
        conv_pool_kernel,
        out_shape=jax.ShapeDtypeStruct((B, point_splits, 1024), jnp.float32),
        grid_spec=pltpu.PrefetchScalarGridSpec(
            num_scalar_prefetch=0,
            grid=(B, point_splits, tiles_per_split),
            in_specs=conv_specs,
            out_specs=pl.BlockSpec((1, 1, 1024), lambda b, s, n: (b, s, 0)),
        ),
        compiler_params=pltpu.CompilerParams(
            dimension_semantics=("parallel", "parallel", "arbitrary"),
            vmem_limit_bytes=32 * 1024 * 1024),
    )(x, *conv_weights)

    # Combine partial maxes (no-op reduce when point_splits == 1).
    pooled = jnp.max(pooled, axis=1)                          # (B, 1024) raw

    # ---- stage 2: batched FC over all pooled rows (MXU sees M=bb, not 1) ----
    bb = min(256, _round_up(B, 8))
    B_pad = _round_up(B, bb)
    if B_pad != B:
        pooled = jnp.pad(pooled, ((0, B_pad - B), (0, 0)))

    fc_weights = [b3, wf1f, b4, wf2f, b5, wf3p, bf3p]
    fc_specs = ([pl.BlockSpec((bb, 1024), lambda i: (i, 0))]
                + [pl.BlockSpec(w.shape, lambda i: (0, 0))
                   for w in fc_weights])

    out = pl.pallas_call(
        fc_kernel,
        out_shape=jax.ShapeDtypeStruct((B_pad, 128), jnp.float32),
        grid_spec=pltpu.PrefetchScalarGridSpec(
            num_scalar_prefetch=0,
            grid=(B_pad // bb,),
            in_specs=fc_specs,
            out_specs=pl.BlockSpec((bb, 128), lambda i: (i, 0)),
        ),
        compiler_params=pltpu.CompilerParams(
            dimension_semantics=("parallel",)),
    )(pooled, *fc_weights)

    return out[:B, :9].reshape(B, 3, 3)


def make_params(key):
    """Deterministic synthetic parameters matching STN3d.__init__ shapes."""
    ks = jax.random.split(key, 20)
    p = {}
    p["w1"] = 0.1 * jax.random.normal(ks[0], (64, 3), jnp.float32)
    p["b1"] = 0.1 * jax.random.normal(ks[1], (64,), jnp.float32)
    p["w2"] = 0.1 * jax.random.normal(ks[2], (128, 64), jnp.float32)
    p["b2"] = 0.1 * jax.random.normal(ks[3], (128,), jnp.float32)
    p["w3"] = 0.1 * jax.random.normal(ks[4], (1024, 128), jnp.float32)
    p["b3"] = 0.1 * jax.random.normal(ks[5], (1024,), jnp.float32)
    p["wf1"] = 0.05 * jax.random.normal(ks[6], (512, 1024), jnp.float32)
    p["bf1"] = 0.05 * jax.random.normal(ks[7], (512,), jnp.float32)
    p["wf2"] = 0.05 * jax.random.normal(ks[8], (256, 512), jnp.float32)
    p["bf2"] = 0.05 * jax.random.normal(ks[9], (256,), jnp.float32)
    p["wf3"] = 0.05 * jax.random.normal(ks[10], (9, 256), jnp.float32)
    p["bf3"] = 0.05 * jax.random.normal(ks[11], (9,), jnp.float32)

    def bn(k, c):
        k0, k1, k2, k3 = jax.random.split(k, 4)
        gamma = 1.0 + 0.1 * jax.random.normal(k0, (c,), jnp.float32)
        beta = 0.1 * jax.random.normal(k1, (c,), jnp.float32)
        mean = 0.1 * jax.random.normal(k2, (c,), jnp.float32)
        var = 0.5 + jax.random.uniform(k3, (c,), jnp.float32)
        return (gamma, beta, mean, var)

    p["bn1"] = bn(ks[12], 64)
    p["bn2"] = bn(ks[13], 128)
    p["bn3"] = bn(ks[14], 1024)
    p["bn4"] = bn(ks[15], 512)
    p["bn5"] = bn(ks[16], 256)
    return p


def stn3d_reference(x_ncw, params):
    """Pure-JAX f32 reference with identical semantics (eval-mode BN)."""
    eps = 1e-5

    def bn_relu(y, gamma, beta, mean, var):
        return jnp.maximum(gamma * (y - mean) / jnp.sqrt(var + eps) + beta, 0.0)

    B = x_ncw.shape[0]
    x = jnp.transpose(x_ncw, (0, 2, 1))                       # (B, N, 3)
    h = bn_relu(x @ params["w1"].T + params["b1"], *params["bn1"])
    h = bn_relu(h @ params["w2"].T + params["b2"], *params["bn2"])
    h = bn_relu(h @ params["w3"].T + params["b3"], *params["bn3"])
    pooled = jnp.max(h, axis=1)                               # (B, 1024)
    f = bn_relu(pooled @ params["wf1"].T + params["bf1"], *params["bn4"])
    f = bn_relu(f @ params["wf2"].T + params["bf2"], *params["bn5"])
    out = f @ params["wf3"].T + params["bf3"]
    iden = jnp.tile(jnp.array([1, 0, 0, 0, 1, 0, 0, 0, 1], jnp.float32), (B, 1))
    return (out + iden).reshape(B, 3, 3)


if __name__ == "__main__":
    key = jax.random.PRNGKey(0)
    kp, kx1, kx2 = jax.random.split(key, 3)
    params = make_params(kp)

    # Case 1: default tiling (single point tile, single split).
    x1 = jax.random.normal(kx1, (2, 3, 16), jnp.float32)      # PyTorch NCW
    out1 = jax.block_until_ready(stn3d_forward(x1, params))
    ref1 = stn3d_reference(x1, params)
    assert out1.shape == (2, 3, 3)
    np.testing.assert_allclose(np.asarray(out1), np.asarray(ref1),
                               rtol=5e-2, atol=5e-2)

    # Case 2: exercise the point-tile accumulator AND the parallel point-split
    # (v7x dual-core) path with a tiny forced tile size.
    x2 = jax.random.normal(kx2, (1, 3, 40), jnp.float32)
    out2 = jax.block_until_ready(
        stn3d_forward(x2, params, tn=8, point_splits=2))
    ref2 = stn3d_reference(x2, params)
    assert out2.shape == (1, 3, 3)
    np.testing.assert_allclose(np.asarray(out2), np.asarray(ref2),
                               rtol=5e-2, atol=5e-2)

    print("KERNEL_OK")
</pallas_src>

<mosaic_0001>
module attributes {stable_mosaic.version = 11 : i64} {
  func.func @conv_pool_kernel(%arg0: i32, %arg1: i32, %arg2: i32, %arg3: memref<1x16x3xf32, #tpu.memory_space<vmem>>, %arg4: memref<3x64xf32, #tpu.memory_space<vmem>>, %arg5: memref<1x64xf32, #tpu.memory_space<vmem>>, %arg6: memref<64x128xbf16, #tpu.memory_space<vmem>>, %arg7: memref<1x128xf32, #tpu.memory_space<vmem>>, %arg8: memref<128x1024xbf16, #tpu.memory_space<vmem>>, %arg9: memref<1x1x1024xf32, #tpu.memory_space<vmem>>) attributes {dimension_semantics = [#tpu.dimension_semantics<parallel>, #tpu.dimension_semantics<parallel>, #tpu.dimension_semantics<arbitrary>], iteration_bounds = array<i64: 2, 1, 1>, scalar_prefetch = 0 : i64, scratch_operands = 0 : i64, tpu.core_type = #tpu.core_type<tc>, window_params = [{transform_indices = @transform_0, window_bounds = array<i64: 1, 16, 3>}, {pipeline_mode = #tpu.pipeline_mode<synchronous>, transform_indices = @transform_1, window_bounds = array<i64: 3, 64>}, {pipeline_mode = #tpu.pipeline_mode<synchronous>, transform_indices = @transform_2, window_bounds = array<i64: 1, 64>}, {pipeline_mode = #tpu.pipeline_mode<synchronous>, transform_indices = @transform_3, window_bounds = array<i64: 64, 128>}, {pipeline_mode = #tpu.pipeline_mode<synchronous>, transform_indices = @transform_4, window_bounds = array<i64: 1, 128>}, {pipeline_mode = #tpu.pipeline_mode<synchronous>, transform_indices = @transform_5, window_bounds = array<i64: 128, 1024>}, {transform_indices = @transform_6, window_bounds = array<i64: 1, 1, 1024>}]} {
    %c0 = arith.constant 0 : index
    %c0_0 = arith.constant 0 : index
    %c0_1 = arith.constant 0 : index
    %0 = vector.load %arg3[%c0, %c0_0, %c0_1] : memref<1x16x3xf32, #tpu.memory_space<vmem>>, vector<1x16x3xf32>
    %1 = vector.shape_cast %0 : vector<1x16x3xf32> to vector<16x3xf32>
    %2 = vector.extract_strided_slice %1 {offsets = [0, 0], sizes = [16, 1], strides = [1, 1]} : vector<16x3xf32> to vector<16x1xf32>
    %c0_2 = arith.constant 0 : index
    %c0_3 = arith.constant 0 : index
    %3 = vector.load %arg4[%c0_2, %c0_3] : memref<3x64xf32, #tpu.memory_space<vmem>>, vector<1x64xf32>
    %4 = vector.broadcast %2 : vector<16x1xf32> to vector<16x64xf32>
    %5 = vector.broadcast %3 : vector<1x64xf32> to vector<16x64xf32>
    %6 = arith.mulf %4, %5 : vector<16x64xf32>
    %7 = vector.extract_strided_slice %1 {offsets = [0, 1], sizes = [16, 1], strides = [1, 1]} : vector<16x3xf32> to vector<16x1xf32>
    %c1 = arith.constant 1 : index
    %c0_4 = arith.constant 0 : index
    %8 = vector.load %arg4[%c1, %c0_4] : memref<3x64xf32, #tpu.memory_space<vmem>>, vector<1x64xf32>
    %9 = vector.broadcast %7 : vector<16x1xf32> to vector<16x64xf32>
    %10 = vector.broadcast %8 : vector<1x64xf32> to vector<16x64xf32>
    %11 = arith.mulf %9, %10 : vector<16x64xf32>
    %12 = arith.addf %6, %11 : vector<16x64xf32>
    %13 = vector.extract_strided_slice %1 {offsets = [0, 2], sizes = [16, 1], strides = [1, 1]} : vector<16x3xf32> to vector<16x1xf32>
    %c2 = arith.constant 2 : index
    %c0_5 = arith.constant 0 : index
    %14 = vector.load %arg4[%c2, %c0_5] : memref<3x64xf32, #tpu.memory_space<vmem>>, vector<1x64xf32>
    %15 = vector.broadcast %13 : vector<16x1xf32> to vector<16x64xf32>
    %16 = vector.broadcast %14 : vector<1x64xf32> to vector<16x64xf32>
    %17 = arith.mulf %15, %16 : vector<16x64xf32>
    %18 = arith.addf %12, %17 : vector<16x64xf32>
    %c0_6 = arith.constant 0 : index
    %c0_7 = arith.constant 0 : index
    %19 = vector.load %arg5[%c0_6, %c0_7] : memref<1x64xf32, #tpu.memory_space<vmem>>, vector<1x64xf32>
    %20 = vector.broadcast %19 : vector<1x64xf32> to vector<16x64xf32>
    %21 = arith.addf %18, %20 : vector<16x64xf32>
    %cst = arith.constant 0.000000e+00 : f32
    %22 = vector.broadcast %cst : f32 to vector<16x64xf32>
    %23 = arith.maximumf %21, %22 : vector<16x64xf32>
    %24 = arith.truncf %23 : vector<16x64xf32> to vector<16x64xbf16>
    %c0_8 = arith.constant 0 : index
    %c0_9 = arith.constant 0 : index
    %25 = vector.load %arg6[%c0_8, %c0_9] : memref<64x128xbf16, #tpu.memory_space<vmem>>, vector<64x128xbf16>
    %cst_10 = arith.constant dense<0.000000e+00> : vector<16x128xf32>
    %26 = tpu.matmul %24, %25, %cst_10 {dimension_numbers = #tpu.dot_dimension_numbers<[1], [0], [0], [1], [0, 0, 1, 1], [], []>} : vector<16x64xbf16>, vector<64x128xbf16>, vector<16x128xf32> -> vector<16x128xf32>
    %c0_11 = arith.constant 0 : index
    %c0_12 = arith.constant 0 : index
    %27 = vector.load %arg7[%c0_11, %c0_12] : memref<1x128xf32, #tpu.memory_space<vmem>>, vector<1x128xf32>
    %28 = vector.broadcast %27 : vector<1x128xf32> to vector<16x128xf32>
    %29 = arith.addf %26, %28 : vector<16x128xf32>
    %cst_13 = arith.constant 0.000000e+00 : f32
    %30 = vector.broadcast %cst_13 : f32 to vector<16x128xf32>
    %31 = arith.maximumf %29, %30 : vector<16x128xf32>
    %32 = arith.truncf %31 : vector<16x128xf32> to vector<16x128xbf16>
    %c0_14 = arith.constant 0 : index
    %c0_15 = arith.constant 0 : index
    %33 = vector.load %arg8[%c0_14, %c0_15] : memref<128x1024xbf16, #tpu.memory_space<vmem>>, vector<128x1024xbf16>
    %cst_16 = arith.constant dense<0.000000e+00> : vector<16x1024xf32>
    %34 = tpu.matmul %32, %33, %cst_16 {dimension_numbers = #tpu.dot_dimension_numbers<[1], [0], [0], [1], [0, 0, 1, 1], [], []>} : vector<16x128xbf16>, vector<128x1024xbf16>, vector<16x1024xf32> -> vector<16x1024xf32>
    %cst_17 = arith.constant dense<0xFF800000> : vector<1024xf32>
    %35 = vector.multi_reduction <maximumf>, %34, %cst_17 [0] : vector<16x1024xf32> to vector<1024xf32>
    %36 = vector.shape_cast %35 : vector<1024xf32> to vector<1x1024xf32>
    %c0_i32 = arith.constant 0 : i32
    %37 = arith.cmpi eq, %arg2, %c0_i32 : i32
    %38 = arith.extui %37 : i1 to i32
    %c0_i32_18 = arith.constant 0 : i32
    %39 = arith.cmpi ne, %38, %c0_i32_18 : i32
    scf.if %39 {
      %c0_21 = arith.constant 0 : index
      %c0_22 = arith.constant 0 : index
      %c0_23 = arith.constant 0 : index
      %43 = vector.load %arg9[%c0_21, %c0_22, %c0_23] : memref<1x1x1024xf32, #tpu.memory_space<vmem>>, vector<1x1x1024xf32>
      %44 = vector.shape_cast %43 : vector<1x1x1024xf32> to vector<1x1024xf32>
      %45 = vector.shape_cast %36 : vector<1x1024xf32> to vector<1x1x1024xf32>
      tpu.vector_store %arg9[%c0_21, %c0_22, %c0_23], %45 {strides = array<i32>} : memref<1x1x1024xf32, #tpu.memory_space<vmem>>, vector<1x1x1024xf32>,
    } else {
    }
    %c0_i32_19 = arith.constant 0 : i32
    %40 = arith.cmpi sgt, %arg2, %c0_i32_19 : i32
    %41 = arith.extui %40 : i1 to i32
    %c0_i32_20 = arith.constant 0 : i32
    %42 = arith.cmpi ne, %41, %c0_i32_20 : i32
    scf.if %42 {
      %c0_21 = arith.constant 0 : index
      %c0_22 = arith.constant 0 : index
      %c0_23 = arith.constant 0 : index
      %43 = vector.load %arg9[%c0_21, %c0_22, %c0_23] : memref<1x1x1024xf32, #tpu.memory_space<vmem>>, vector<1x1x1024xf32>
      %44 = vector.shape_cast %43 : vector<1x1x1024xf32> to vector<1x1024xf32>
      %45 = arith.maximumf %44, %36 : vector<1x1024xf32>
      %c0_24 = arith.constant 0 : index
      %c0_25 = arith.constant 0 : index
      %c0_26 = arith.constant 0 : index
      %46 = vector.load %arg9[%c0_24, %c0_25, %c0_26] : memref<1x1x1024xf32, #tpu.memory_space<vmem>>, vector<1x1x1024xf32>
      %47 = vector.shape_cast %46 : vector<1x1x1024xf32> to vector<1x1024xf32>
      %48 = vector.shape_cast %45 : vector<1x1024xf32> to vector<1x1x1024xf32>
      tpu.vector_store %arg9[%c0_24, %c0_25, %c0_26], %48 {strides = array<i32>} : memref<1x1x1024xf32, #tpu.memory_space<vmem>>, vector<1x1x1024xf32>,
    } else {
    }
    return
  }
  func.func @transform_0(%arg0: i32, %arg1: i32, %arg2: i32) -> (i32, i32, i32) {
    %c1_i32 = arith.constant 1 : i32
    %0 = arith.muli %arg1, %c1_i32 : i32
    %1 = arith.addi %0, %arg2 : i32
    %c0_i32 = arith.constant 0 : i32
    %c0_i32_0 = arith.constant 0 : i32
    return %arg0, %1, %c0_i32 : i32, i32, i32
  }
  func.func @transform_1(%arg0: i32, %arg1: i32, %arg2: i32) -> (i32, i32) {
    %c0_i32 = arith.constant 0 : i32
    %c0_i32_0 = arith.constant 0 : i32
    %c0_i32_1 = arith.constant 0 : i32
    return %c0_i32, %c0_i32_0 : i32, i32
  }
  func.func @transform_2(%arg0: i32, %arg1: i32, %arg2: i32) -> (i32, i32) {
    %c0_i32 = arith.constant 0 : i32
    %c0_i32_0 = arith.constant 0 : i32
    %c0_i32_1 = arith.constant 0 : i32
    return %c0_i32, %c0_i32_0 : i32, i32
  }
  func.func @transform_3(%arg0: i32, %arg1: i32, %arg2: i32) -> (i32, i32) {
    %c0_i32 = arith.constant 0 : i32
    %c0_i32_0 = arith.constant 0 : i32
    %c0_i32_1 = arith.constant 0 : i32
    return %c0_i32, %c0_i32_0 : i32, i32
  }
  func.func @transform_4(%arg0: i32, %arg1: i32, %arg2: i32) -> (i32, i32) {
    %c0_i32 = arith.constant 0 : i32
    %c0_i32_0 = arith.constant 0 : i32
    %c0_i32_1 = arith.constant 0 : i32
    return %c0_i32, %c0_i32_0 : i32, i32
  }
  func.func @transform_5(%arg0: i32, %arg1: i32, %arg2: i32) -> (i32, i32) {
    %c0_i32 = arith.constant 0 : i32
    %c0_i32_0 = arith.constant 0 : i32
    %c0_i32_1 = arith.constant 0 : i32
    return %c0_i32, %c0_i32_0 : i32, i32
  }
  func.func @transform_6(%arg0: i32, %arg1: i32, %arg2: i32) -> (i32, i32, i32) {
    %c0_i32 = arith.constant 0 : i32
    %c0_i32_0 = arith.constant 0 : i32
    return %arg0, %arg1, %c0_i32 : i32, i32, i32
  }
}

</mosaic_0001>

<llo_original>
// kernel: tpu_custom_call.1
$region0: #{tpu_custom_call.1}
  #allocation0 [shape = 'u32[]', space=smem, size = 0x4, offset = 0x4, fixed_abs, tag = 'smem constant byte address 0x4 - core index']
  #allocation1 [shape = 'u32[144,128]{1,0:T(1,128)}', space=vmem, size = 0x12000, scoped, tag = 'internal scratch']
  %s0 = inlined_call_operand.vmem [shape: f32[2,16,3], index: 0, kind: input, shape index: {}]
  %s1 = inlined_call_operand.vmem [shape: f32[3,64], index: 1, kind: input, shape index: {}]
  %s2 = inlined_call_operand.vmem [shape: f32[1,64], index: 2, kind: input, shape index: {}]
  %s3 = inlined_call_operand.vmem [shape: bf16[64,128], index: 3, kind: input, shape index: {}]
  %s4 = inlined_call_operand.vmem [shape: f32[1,128], index: 4, kind: input, shape index: {}]
  %s5 = inlined_call_operand.hbm [shape: bf16[128,1024], index: 5, kind: input, shape index: {}]
  %s6 = inlined_call_operand.hbm [shape: f32[2,1,1024], index: 6, kind: output, shape index: {}]
  %s7 = sld [smem:[#allocation0]]
  $region69: #{tpu_custom_call.1} parent=0
    _
  %s9 = ssub.s32 1, %s7
  %s10 = scalar_select 0, %s9, %s7
  $region1: #{tpu_custom_call.1} parent=0
    #allocation2 [shape = 'u8[262144]{0}', space=vmem, size = 0x40000, scoped, tag = 'input window, operand 5, single buffered']
    #allocation3 [shape = 's32[2]{0}', space=sflag, size = 0x8, scoped, tag = 'scoped memory for tpu_custom_call.1']
    #allocation4 [shape = 's32[2]{0}', space=sflag, size = 0x8, scoped, tag = 'scoped memory for tpu_custom_call.1']
    #allocation5 [shape = 'u8[8192]{0}', space=vmem, size = 0x2000, scoped, tag = 'output window, operand 0']
    %11 = vsyncpa [#allocation3], 0
    %12 = vsyncpa [#allocation4], 0
    %s13 = scalar_lea.sflag [#allocation4], 1
    %14 = vsyncpa %s13, 0
    loop: start=0, step=1, limit=4
    $region2: #{tpu_custom_call.1} parent=1 // loop_pre_header
      _
    $region3: #{tpu_custom_call.1} parent=1 // loop_header
      %s16 = sphi 0, %s20
      %p17 = scmp.ge.s32.totalorder %s16, 4
      %s23 = sphi 0, %s42
      %s24 = sphi 0, %s38
      %s25 = sphi 0, %s34
      %s26 = sphi 0, %s23
      %s27 = sphi 0, %s24
      %s28 = sphi 0, %s25
      %s29 = sphi 0, %s26
      %s30 = sphi 0, %s27
      %s31 = sphi 0, %s28
      %s49 = sphi 0, %s51
      %s52 = sphi 0, %s49
      %s53 = sphi 0, %s52
      %s69 = sphi 0, %s53
      %s73 = sphi 0, %s73
      %s75 = sphi 0, %s73
      %s76 = sphi 0, %s75
      %s90 = sphi 0, %s76
      %s94 = sphi 0, %s94
      %s96 = sphi 0, %s94
      %s97 = sphi 0, %s96
      %s111 = sphi 0, %s97
      %s115 = sphi 0, %s115
      %s117 = sphi 0, %s115
      %s118 = sphi 0, %s117
      %s132 = sphi 0, %s118
      %s136 = sphi 0, %s136
      %s138 = sphi 0, %s136
      %s139 = sphi 0, %s138
      %s153 = sphi 0, %s139
      %s157 = sphi 0, %s157
      %s159 = sphi 0, %s157
      %s160 = sphi 0, %s159
      %s174 = sphi 0, %s160
      %s182 = sphi 0, %s184
      %s185 = sphi 0, %s182
      %s186 = sphi 0, %s185
      %s202 = sphi 0, %s186
    $region4: #{tpu_custom_call.1} parent=1 // loop_header_branch
      %19 = sbr.rel (%p17) target = $region8
    $region5: #{tpu_custom_call.1} parent=1 // loop_body
      %s21 = ssub.s32 %s16, 1
      %s22 = ssub.s32 %s16, 2
      %s32 = sadd.s32 1, %s25
      %p33 = scmp.ge.s32.totalorder %s32, 1
      %s34 = scalar_select %p33, 0, %s32
      %s35 = sadd.s32 1, %s24
      %s36 = scalar_select %p33, %s35, %s24
      %p37 = scmp.ge.s32.totalorder %s36, 1
      %s38 = scalar_select %p37, 0, %s36
      %s39 = sadd.s32 1, %s23
      %s40 = scalar_select %p37, %s39, %s23
      %p41 = scmp.ge.s32.totalorder %s40, 2
      %s42 = scalar_select %p41, 0, %s40
      %s43 = sadd.s32 %s24, %s25
      %s44 = sadd.s32 %s38, %s34
      %s45 = ssub.s32 %s23, %s42
      %s46 = ssub.s32 %s43, %s44
      %s47 = sor.u32 %s45, %s46
      %p48 = scmp.eq.s32.totalorder %s47, 0
      %s50 = sadd.s32 %s49, 1
      %s51 = scalar_select %p48, %s49, %s50
      %p54 = pneg %p48
      %p55 = scmp.eq.s32.totalorder %s16, 1
      %p56 = por %p54, %p55
      %p57 = scmp.ne.s32.totalorder %s49, %s52
      %p58 = scmp.eq.s32.totalorder %s16, 0
      %p59 = por %p57, %p58
      %p60 = scmp.ne.s32.totalorder %s49, %s52
      %p61 = scmp.eq.s32.totalorder %s21, 1
      %p62 = por %p60, %p61
      %p63 = scmp.ne.s32.totalorder %s52, %s53
      %p64 = scmp.eq.s32.totalorder %s21, 0
      %p65 = por %p63, %p64
      %p66 = scmp.ne.s32.totalorder %s52, %s53
      %p67 = scmp.eq.s32.totalorder %s22, 1
      %p68 = por %p66, %p67
      %p70 = scmp.ne.s32.totalorder %s53, %s69
      %p71 = scmp.eq.s32.totalorder %s22, 0
      %p72 = por %p70, %p71
      %s74 = sadd.s32 %s73, 1
      %p77 = scmp.eq.s32.totalorder %s16, 1
      %p78 = scmp.ne.s32.totalorder %s73, %s75
      %p79 = scmp.eq.s32.totalorder %s16, 0
      %p80 = por %p78, %p79
      %p81 = scmp.ne.s32.totalorder %s73, %s75
      %p82 = scmp.eq.s32.totalorder %s21, 1
      %p83 = por %p81, %p82
      %p84 = scmp.ne.s32.totalorder %s75, %s76
      %p85 = scmp.eq.s32.totalorder %s21, 0
      %p86 = por %p84, %p85
      %p87 = scmp.ne.s32.totalorder %s75, %s76
      %p88 = scmp.eq.s32.totalorder %s22, 1
      %p89 = por %p87, %p88
      %p91 = scmp.ne.s32.totalorder %s76, %s90
      %p92 = scmp.eq.s32.totalorder %s22, 0
      %p93 = por %p91, %p92
      %s95 = sadd.s32 %s94, 1
      %p98 = scmp.eq.s32.totalorder %s16, 1
      %p99 = scmp.ne.s32.totalorder %s94, %s96
      %p100 = scmp.eq.s32.totalorder %s16, 0
      %p101 = por %p99, %p100
      %p102 = scmp.ne.s32.totalorder %s94, %s96
      %p103 = scmp.eq.s32.totalorder %s21, 1
      %p104 = por %p102, %p103
      %p105 = scmp.ne.s32.totalorder %s96, %s97
      %p106 = scmp.eq.s32.totalorder %s21, 0
      %p107 = por %p105, %p106
      %p108 = scmp.ne.s32.totalorder %s96, %s97
      %p109 = scmp.eq.s32.totalorder %s22, 1
      %p110 = por %p108, %p109
      %p112 = scmp.ne.s32.totalorder %s97, %s111
      %p113 = scmp.eq.s32.totalorder %s22, 0
      %p114 = por %p112, %p113
      %s116 = sadd.s32 %s115, 1
      %p119 = scmp.eq.s32.totalorder %s16, 1
      %p120 = scmp.ne.s32.totalorder %s115, %s117
      %p121 = scmp.eq.s32.totalorder %s16, 0
      %p122 = por %p120, %p121
      %p123 = scmp.ne.s32.totalorder %s115, %s117
      %p124 = scmp.eq.s32.totalorder %s21, 1
      %p125 = por %p123, %p124
      %p126 = scmp.ne.s32.totalorder %s117, %s118
      %p127 = scmp.eq.s32.totalorder %s21, 0
      %p128 = por %p126, %p127
      %p129 = scmp.ne.s32.totalorder %s117, %s118
      %p130 = scmp.eq.s32.totalorder %s22, 1
      %p131 = por %p129, %p130
      %p133 = scmp.ne.s32.totalorder %s118, %s132
      %p134 = scmp.eq.s32.totalorder %s22, 0
      %p135 = por %p133, %p134
      %s137 = sadd.s32 %s136, 1
      %p140 = scmp.eq.s32.totalorder %s16, 1
      %p141 = scmp.ne.s32.totalorder %s136, %s138
      %p142 = scmp.eq.s32.totalorder %s16, 0
      %p143 = por %p141, %p142
      %p144 = scmp.ne.s32.totalorder %s136, %s138
      %p145 = scmp.eq.s32.totalorder %s21, 1
      %p146 = por %p144, %p145
      %p147 = scmp.ne.s32.totalorder %s138, %s139
      %p148 = scmp.eq.s32.totalorder %s21, 0
      %p149 = por %p147, %p148
      %p150 = scmp.ne.s32.totalorder %s138, %s139
      %p151 = scmp.eq.s32.totalorder %s22, 1
      %p152 = por %p150, %p151
      %p154 = scmp.ne.s32.totalorder %s139, %s153
      %p155 = scmp.eq.s32.totalorder %s22, 0
      %p156 = por %p154, %p155
      %s158 = sadd.s32 %s157, 1
      %p161 = scmp.eq.s32.totalorder %s16, 1
      %p162 = scmp.ne.s32.totalorder %s157, %s159
      %p163 = scmp.eq.s32.totalorder %s16, 0
      %p164 = por %p162, %p163
      %p165 = scmp.ne.s32.totalorder %s157, %s159
      %p166 = scmp.eq.s32.totalorder %s21, 1
      %p167 = por %p165, %p166
      %p168 = scmp.ne.s32.totalorder %s159, %s160
      %p169 = scmp.eq.s32.totalorder %s21, 0
      %p170 = por %p168, %p169
      %p171 = scmp.ne.s32.totalorder %s159, %s160
      %p172 = scmp.eq.s32.totalorder %s22, 1
      %p173 = por %p171, %p172
      %p175 = scmp.ne.s32.totalorder %s160, %s174
      %p176 = scmp.eq.s32.totalorder %s22, 0
      %p177 = por %p175, %p176
      %s178 = ssub.s32 %s23, %s42
      %s179 = ssub.s32 %s24, %s38
      %s180 = sor.u32 %s178, %s179
      %p181 = scmp.eq.s32.totalorder %s180, 0
      %s183 = sadd.s32 %s182, 1
      %s184 = scalar_select %p181, %s182, %s183
      %p187 = pneg %p181
      %p188 = scmp.eq.s32.totalorder %s16, 1
      %p189 = por %p187, %p188
      %p190 = scmp.ne.s32.totalorder %s182, %s185
      %p191 = scmp.eq.s32.totalorder %s16, 0
      %p192 = por %p190, %p191
      %p193 = scmp.ne.s32.totalorder %s182, %s185
      %p194 = scmp.eq.s32.totalorder %s21, 1
      %p195 = por %p193, %p194
      %p196 = scmp.ne.s32.totalorder %s185, %s186
      %p197 = scmp.eq.s32.totalorder %s21, 0
      %p198 = por %p196, %p197
      %p199 = scmp.ne.s32.totalorder %s185, %s186
      %p200 = scmp.eq.s32.totalorder %s22, 1
      %p201 = por %p199, %p200
      %p203 = scmp.ne.s32.totalorder %s186, %s202
      %p204 = scmp.eq.s32.totalorder %s22, 0
      %p205 = por %p203, %p204
      %p206 = scmp.le.s32.totalorder 1, %s16
      %p207 = scmp.lt.s32.totalorder %s16, 3
      %p208 = pnand %p206, %p207
      %p209 = pneg %p208
      // Predicated region
      $region9: #{tpu_custom_call.1} parent=5 // pred_check
        _
      $region10: #{tpu_custom_call.1} parent=5 // pred_check_branch
        %211 = sbr.rel (%p208) target = $region12
      $region11: #{tpu_custom_call.1} parent=5 // pred_region
        %s212 = ssub.s32 %s16, 1
        // Predicated region
        $region13: #{tpu_custom_call.1} parent=11 // pred_check
          %p213 = pneg %p86
        $region14: #{tpu_custom_call.1} parent=11 // pred_check_branch
          %215 = sbr.rel (%p213) target = $region16
        $region15: #{tpu_custom_call.1} parent=11 // pred_region
          _
        $region16: #{tpu_custom_call.1} parent=11 // pred_fallthru
          _
        // Predicated region
        $region17: #{tpu_custom_call.1} parent=11 // pred_check
          %p216 = pneg %p107
        $region18: #{tpu_custom_call.1} parent=11 // pred_check_branch
          %218 = sbr.rel (%p216) target = $region20
        $region19: #{tpu_custom_call.1} parent=11 // pred_region
          _
        $region20: #{tpu_custom_call.1} parent=11 // pred_fallthru
          _
        // Predicated region
        $region21: #{tpu_custom_call.1} parent=11 // pred_check
          %p219 = pneg %p128
        $region22: #{tpu_custom_call.1} parent=11 // pred_check_branch
          %221 = sbr.rel (%p219) target = $region24
        $region23: #{tpu_custom_call.1} parent=11 // pred_region
          _
        $region24: #{tpu_custom_call.1} parent=11 // pred_fallthru
          _
        // Predicated region
        $region25: #{tpu_custom_call.1} parent=11 // pred_check
          %p222 = pneg %p149
        $region26: #{tpu_custom_call.1} parent=11 // pred_check_branch
          %224 = sbr.rel (%p222) target = $region28
        $region27: #{tpu_custom_call.1} parent=11 // pred_region
          _
        $region28: #{tpu_custom_call.1} parent=11 // pred_fallthru
          _
        // Predicated region
        $region29: #{tpu_custom_call.1} parent=11 // pred_check
          %p225 = pneg %p170
        $region30: #{tpu_custom_call.1} parent=11 // pred_check_branch
          %227 = sbr.rel (%p225) target = $region32
        $region31: #{tpu_custom_call.1} parent=11 // pred_region
          %s229 = ssub.s32 8192, 8192
          %230 = vsyncadd [#allocation3], %s229
          %s231 = sshll.u32 [#allocation2], 4
          %s232 = int_to_ptr.vmem [resolvable:$true] %s231
          %237 = dma.hbm_to_vmem [thread:$0]  %s5, 8192, %s232, [#allocation3], 512, 512, 32
        $region32: #{tpu_custom_call.1} parent=11 // pred_fallthru
          _
      $region12: #{tpu_custom_call.1} parent=5 // pred_fallthru
        _
      %p238 = scmp.lt.s32.totalorder %s16, 2
      // Predicated region
      $region33: #{tpu_custom_call.1} parent=5 // pred_check
        %p239 = pneg %p238
      $region34: #{tpu_custom_call.1} parent=5 // pred_check_branch
        %241 = sbr.rel (%p239) target = $region36
      $region35: #{tpu_custom_call.1} parent=5 // pred_region
        // Predicated region
        $region37: #{tpu_custom_call.1} parent=35 // pred_check
          %p242 = pneg %p59
        $region38: #{tpu_custom_call.1} parent=35 // pred_check_branch
          %244 = sbr.rel (%p242) target = $region40
        $region39: #{tpu_custom_call.1} parent=35 // pred_region
          %s245 = sadd.s32 %s24, %s25
          %s246 = smul.u32 2, %s245
          %p247 = scmp.lt.s32.totalorder %s23, 1
          %s248 = scalar_select %p247, %s23, 1
          %p249 = scmp.lt.s32.totalorder %s246, 1
          %s250 = scalar_select %p249, %s246, 1
          %s251 = smul.addr %s248, 2
          %s252 = sadd.s32 %s250, %s251
          %s253 = smul.addr %s252, 8
          %s254 = scalar_lea.vmem %s0, %s253
          %s255 = sadd.s32 %s24, %s25
          %s256 = smul.u32 2, %s255
        $region40: #{tpu_custom_call.1} parent=35 // pred_fallthru
          _
      $region36: #{tpu_custom_call.1} parent=5 // pred_fallthru
        _
      %p257 = scmp.le.s32.totalorder 1, %s16
      %p258 = scmp.lt.s32.totalorder %s16, 3
      %p259 = pnand %p257, %p258
      %p260 = pneg %p259
      // Predicated region
      $region41: #{tpu_custom_call.1} parent=5 // pred_check
        _
      $region42: #{tpu_custom_call.1} parent=5 // pred_check_branch
        %262 = sbr.rel (%p259) target = $region44
      $region43: #{tpu_custom_call.1} parent=5 // pred_region
        %s263 = ssub.s32 %s16, 1
        // Predicated region
        $region45: #{tpu_custom_call.1} parent=43 // pred_check
          %p264 = pneg %p170
        $region46: #{tpu_custom_call.1} parent=43 // pred_check_branch
          %266 = sbr.rel (%p264) target = $region48
        $region47: #{tpu_custom_call.1} parent=43 // pred_region
          %267 = dma.done [#allocation3], 8192
        $region48: #{tpu_custom_call.1} parent=43 // pred_fallthru
          _
        %s268 = sadd.s32 %s27, %s28
        %s269 = smul.u32 2, %s268
        %p270 = scmp.lt.s32.totalorder %s26, 1
        %s271 = scalar_select %p270, %s26, 1
        %p272 = scmp.lt.s32.totalorder %s269, 1
        %s273 = scalar_select %p272, %s269, 1
        %s274 = smul.addr %s271, 2
        %s275 = sadd.s32 %s273, %s274
        %s276 = smul.addr %s275, 8
        %s277 = scalar_lea.vmem %s0, %s276
        %p278 = pneg %p65
        %p279 = pneg %p62
        %p280 = pneg %p86
        %p281 = pneg %p83
        %p282 = pneg %p107
        %p283 = pneg %p104
        %p284 = pneg %p128
        %p285 = pneg %p125
        %p286 = pneg %p149
        %p287 = pneg %p146
        %p288 = pneg %p170
        %p289 = pneg %p167
        %p290 = pneg %p198
        %p291 = pneg %p195
        %s292 = sand.u32 %s185, 1
        %s293 = scalar_lea.sflag [#allocation4], %s292
        %s294 = sand.u32 %s185, 1
        %s295 = smul.addr %s294, 8
        %s296 = scalar_lea.vmem [#allocation5], %s295
        %s297 = sadd.s32 %s27, %s28
        %s298 = smul.u32 2, %s297
        %p299 = scmp.lt.s32.totalorder %s26, 1
        %s300 = scalar_select %p299, %s26, 1
        %p301 = scmp.lt.s32.totalorder %s298, 1
        %s302 = scalar_select %p301, %s298, 1
        %s303 = smul.addr %s300, 2
        %s304 = sadd.s32 %s302, %s303
        %s305 = smul.addr %s304, 8
        %s306 = scalar_lea.vmem %s0, %s305
        %s307 = sadd.s32 %s27, %s28
        %s308 = smul.u32 2, %s307
        %v310 = vld [vmem:[%s306] sm:$0xff]
        %v311 = vld [vmem:[%s306 + $0x8] sm:$0xff]
        %v312 = vld [vmem:[%s1] sm:$0x1]
        %314 = vset.pattern.permute.xlu0 0
        %315 = vperm.xlu0 %314, %v310
        %v316 = vpop.permute.xlu0 %315
        %319 = vset.pattern.permute.xlu0 0
        %320 = vperm.xlu0 %319, %v311
        %v321 = vpop.permute.xlu0 %320
        %v323 = vlaneseq
        %v324 = vshrl.u32 %v323, 7
        %v325 = vsub.s32 0, %v324
        %v326 = vrot.slane %v312, %v325
        %v327 = vmul.f32 %v316, %v326
        %v328 = vmul.f32 %v321, %v326
        %v329 = vld [vmem:[%s1 + $0x1] sm:$0x1]
        %330 = vset.pattern.permute.xlu0 1
        %331 = vperm.xlu0 %330, %v310
        %v332 = vpop.permute.xlu0 %331
        %334 = vset.pattern.permute.xlu0 1
        %335 = vperm.xlu0 %334, %v311
        %v336 = vpop.permute.xlu0 %335
        %v338 = vlaneseq
        %v339 = vshrl.u32 %v338, 7
        %v340 = vsub.s32 0, %v339
        %v341 = vrot.slane %v329, %v340
        %v342 = vmul.f32 %v332, %v341
        %v343 = vmul.f32 %v336, %v341
        %v344 = vadd.f32 %v327, %v342
        %v345 = vadd.f32 %v328, %v343
        %v346 = vld [vmem:[%s1 + $0x2] sm:$0x1]
        %347 = vset.pattern.permute.xlu0 2
        %348 = vperm.xlu0 %347, %v310
        %v349 = vpop.permute.xlu0 %348
        %351 = vset.pattern.permute.xlu0 2
        %352 = vperm.xlu0 %351, %v311
        %v353 = vpop.permute.xlu0 %352
        %v355 = vlaneseq
        %v356 = vshrl.u32 %v355, 7
        %v357 = vsub.s32 0, %v356
        %v358 = vrot.slane %v346, %v357
        %v359 = vmul.f32 %v349, %v358
        %v360 = vmul.f32 %v353, %v358
        %v361 = vadd.f32 %v344, %v359
        %v362 = vadd.f32 %v345, %v360
        %v363 = vld [vmem:[%s2] sm:$0x1]
        %v365 = vlaneseq
        %v366 = vshrl.u32 %v365, 7
        %v367 = vsub.s32 0, %v366
        %v368 = vrot.slane %v363, %v367
        %v370 = vadd.f32 %v361, %v368
        %v371 = vadd.f32 %v362, %v368
        %v372 = vmax.f32 %v370, 0.0
        %v373 = vmax.f32 %v371, 0.0
        %v374 = vpack.c.bf16 %v373, %v372
        %v375 = vld [vmem:[%s3] sm:$0xf]
        %v376 = vld [vmem:[%s3 + $0x4] sm:$0xf]
        %v377 = vld [vmem:[%s3 + $0x8] sm:$0xf]
        %v378 = vld [vmem:[%s3 + $0xc] sm:$0xf]
        %v379 = vld [vmem:[%s3 + $0x10] sm:$0xf]
        %v380 = vld [vmem:[%s3 + $0x14] sm:$0xf]
        %v381 = vld [vmem:[%s3 + $0x18] sm:$0xf]
        %v382 = vld [vmem:[%s3 + $0x1c] sm:$0xf]
        %v383 = vld [vmem:[%s4] sm:$0x1]
        %v385 = vlaneseq
        %v386 = vshrl.u32 %v385, 7
        %v387 = vsub.s32 0, %v386
        %v388 = vrot.slane %v383, %v387
        %v398 = vunpack.c.l.b16 %v375
        %v399 = vunpack.c.l.b16 %v376
        %v400 = vunpack.c.l.b16 %v377
        %v401 = vunpack.c.l.b16 %v378
        %v402 = vunpack.c.l.b16 %v379
        %v403 = vunpack.c.l.b16 %v380
        %v404 = vunpack.c.l.b16 %v381
        %v405 = vunpack.c.l.b16 %v382
        %v406 = vpack.c.b16 %v399, %v398
        %v407 = vpack.c.b16 %v401, %v400
        %v408 = vpack.c.b16 %v403, %v402
        %v409 = vpack.c.b16 %v405, %v404
        %vm414 = vcmask 523264
        %v416 = vsel %vm414, %v374, 0
        %418 = vmatprep.subr.bf16.mxu0 0
        %419 = vmatpush1.bf16.msra.mxu0 %v406
        %420 = vmatprep.subr.bf16.mxu0 0
        %421 = vmatpush1.bf16.msra.mxu0 %v407
        %422 = vmatprep.subr.bf16.mxu0 0
        %423 = vmatpush1.bf16.msra.mxu0 %v408
        %424 = vmatprep.subr.bf16.mxu0 0
        %425 = vmatpush1.bf16.msra.mxu0 %v409
        %426 = vmatprep.subr.bf16.mxu0 0
        %427 = vmatpush1.bf16.msra.mxu0 0
        %428 = vmatprep.subr.bf16.mxu0 0
        %429 = vmatpush1.bf16.msra.mxu0 0
        %430 = vmatprep.subr.bf16.mxu0 0
        %431 = vmatpush1.bf16.msra.mxu0 0
        %432 = vmatprep.subr.bf16.mxu0 0
        %433 = vmatpush1.bf16.msra.mxu0 0
        %434 = vmatprep.subr.bf16.mxu0 0
        %435 = vmatpush1.bf16.msra.mxu0 0
        %436 = vmatprep.subr.bf16.mxu0 0
        %437 = vmatpush1.bf16.msra.mxu0 0
        %438 = vmatprep.subr.bf16.mxu0 0
        %439 = vmatpush1.bf16.msra.mxu0 0
        %440 = vmatprep.subr.bf16.mxu0 0
        %441 = vmatpush1.bf16.msra.mxu0 0
        %442 = vmatprep.subr.bf16.mxu0 0
        %443 = vmatpush1.bf16.msra.mxu0 0
        %444 = vmatprep.subr.bf16.mxu0 0
        %445 = vmatpush1.bf16.msra.mxu0 0
        %446 = vmatprep.subr.bf16.mxu0 0
        %447 = vmatpush1.bf16.msra.mxu0 0
        %448 = vmatprep.subr.bf16.mxu0 0
        %449 = vmatpush1.bf16.msra.mxu0 0
        %450 = vmatprep.mubr.bf16.mxu0 0
        %451 = vmatmul.mubr.bf16.gmra.mrb[0].mxu0 %v416
        %v452 = vpop.f32.mrb[0].mxu0
        %v453 = vadd.f32 %v388, %v452
        %v454 = vpop.f32.mrb[0].mxu0
        %v455 = vpop.f32.mrb[0].mxu0
        %v456 = vadd.f32 %v388, %v455
        %v457 = vpop.f32.mrb[0].mxu0
        %458 = vdwg.mxu0
        %v459 = vmax.f32 %v453, 0.0
        %v460 = vmax.f32 %v456, 0.0
        %v461 = vpack.c.bf16 %v460, %v459
        %v462 = vld [vmem:[#allocation2] sm:$0xff]
        %v463 = vld [vmem:[#allocation2 + $0x8] sm:$0xff]
        %v464 = vld [vmem:[#allocation2 + $0x10] sm:$0xff]
        %v465 = vld [vmem:[#allocation2 + $0x18] sm:$0xff]
        %v466 = vld [vmem:[#allocation2 + $0x20] sm:$0xff]
        %v467 = vld [vmem:[#allocation2 + $0x28] sm:$0xff]
        %v468 = vld [vmem:[#allocation2 + $0x30] sm:$0xff]
        %v469 = vld [vmem:[#allocation2 + $0x38] sm:$0xff]
        %v470 = vld [vmem:[#allocation2 + $0x40] sm:$0xff]
        %v471 = vld [vmem:[#allocation2 + $0x48] sm:$0xff]
        %v472 = vld [vmem:[#allocation2 + $0x50] sm:$0xff]
        %v473 = vld [vmem:[#allocation2 + $0x58] sm:$0xff]
        %v474 = vld [vmem:[#allocation2 + $0x60] sm:$0xff]
        %v475 = vld [vmem:[#allocation2 + $0x68] sm:$0xff]
        %v476 = vld [vmem:[#allocation2 + $0x70] sm:$0xff]
        %v477 = vld [vmem:[#allocation2 + $0x78] sm:$0xff]
        %v478 = vld [vmem:[#allocation2 + $0x80] sm:$0xff]
        %v479 = vld [vmem:[#allocation2 + $0x88] sm:$0xff]
        %v480 = vld [vmem:[#allocation2 + $0x90] sm:$0xff]
        %v481 = vld [vmem:[#allocation2 + $0x98] sm:$0xff]
        %v482 = vld [vmem:[#allocation2 + $0xa0] sm:$0xff]
        %v483 = vld [vmem:[#allocation2 + $0xa8] sm:$0xff]
        %v484 = vld [vmem:[#allocation2 + $0xb0] sm:$0xff]
        %v485 = vld [vmem:[#allocation2 + $0xb8] sm:$0xff]
        %v486 = vld [vmem:[#allocation2 + $0xc0] sm:$0xff]
        %v487 = vld [vmem:[#allocation2 + $0xc8] sm:$0xff]
        %v488 = vld [vmem:[#allocation2 + $0xd0] sm:$0xff]
        %v489 = vld [vmem:[#allocation2 + $0xd8] sm:$0xff]
        %v490 = vld [vmem:[#allocation2 + $0xe0] sm:$0xff]
        %v491 = vld [vmem:[#allocation2 + $0xe8] sm:$0xff]
        %v492 = vld [vmem:[#allocation2 + $0xf0] sm:$0xff]
        %v493 = vld [vmem:[#allocation2 + $0xf8] sm:$0xff]
        %v494 = vld [vmem:[#allocation2 + $0x100] sm:$0xff]
        %v495 = vld [vmem:[#allocation2 + $0x108] sm:$0xff]
        %v496 = vld [vmem:[#allocation2 + $0x110] sm:$0xff]
        %v497 = vld [vmem:[#allocation2 + $0x118] sm:$0xff]
        %v498 = vld [vmem:[#allocation2 + $0x120] sm:$0xff]
        %v499 = vld [vmem:[#allocation2 + $0x128] sm:$0xff]
        %v500 = vld [vmem:[#allocation2 + $0x130] sm:$0xff]
        %v501 = vld [vmem:[#allocation2 + $0x138] sm:$0xff]
        %v502 = vld [vmem:[#allocation2 + $0x140] sm:$0xff]
        %v503 = vld [vmem:[#allocation2 + $0x148] sm:$0xff]
        %v504 = vld [vmem:[#allocation2 + $0x150] sm:$0xff]
        %v505 = vld [vmem:[#allocation2 + $0x158] sm:$0xff]
        %v506 = vld [vmem:[#allocation2 + $0x160] sm:$0xff]
        %v507 = vld [vmem:[#allocation2 + $0x168] sm:$0xff]
        %v508 = vld [vmem:[#allocation2 + $0x170] sm:$0xff]
        %v509 = vld [vmem:[#allocation2 + $0x178] sm:$0xff]
        %v510 = vld [vmem:[#allocation2 + $0x180] sm:$0xff]
        %v511 = vld [vmem:[#allocation2 + $0x188] sm:$0xff]
        %v512 = vld [vmem:[#allocation2 + $0x190] sm:$0xff]
        %v513 = vld [vmem:[#allocation2 + $0x198] sm:$0xff]
        %v514 = vld [vmem:[#allocation2 + $0x1a0] sm:$0xff]
        %v515 = vld [vmem:[#allocation2 + $0x1a8] sm:$0xff]
        %v516 = vld [vmem:[#allocation2 + $0x1b0] sm:$0xff]
        %v517 = vld [vmem:[#allocation2 + $0x1b8] sm:$0xff]
        %v518 = vld [vmem:[#allocation2 + $0x1c0] sm:$0xff]
        %v519 = vld [vmem:[#allocation2 + $0x1c8] sm:$0xff]
        %v520 = vld [vmem:[#allocation2 + $0x1d0] sm:$0xff]
        %v521 = vld [vmem:[#allocation2 + $0x1d8] sm:$0xff]
        %v522 = vld [vmem:[#allocation2 + $0x1e0] sm:$0xff]
        %v523 = vld [vmem:[#allocation2 + $0x1e8] sm:$0xff]
        %v524 = vld [vmem:[#allocation2 + $0x1f0] sm:$0xff]
        %v525 = vld [vmem:[#allocation2 + $0x1f8] sm:$0xff]
        %v590 = vunpack.c.l.b16 %v462
        %v591 = vunpack.c.h.b16 %v462
        %v592 = vunpack.c.l.b16 %v463
        %v593 = vunpack.c.h.b16 %v463
        %v594 = vunpack.c.l.b16 %v464
        %v595 = vunpack.c.h.b16 %v464
        %v596 = vunpack.c.l.b16 %v465
        %v597 = vunpack.c.h.b16 %v465
        %v598 = vunpack.c.l.b16 %v466
        %v599 = vunpack.c.h.b16 %v466
        %v600 = vunpack.c.l.b16 %v467
        %v601 = vunpack.c.h.b16 %v467
        %v602 = vunpack.c.l.b16 %v468
        %v603 = vunpack.c.h.b16 %v468
        %v604 = vunpack.c.l.b16 %v469
        %v605 = vunpack.c.h.b16 %v469
        %v606 = vunpack.c.l.b16 %v470
        %v607 = vunpack.c.h.b16 %v470
        %v608 = vunpack.c.l.b16 %v471
        %v609 = vunpack.c.h.b16 %v471
        %v610 = vunpack.c.l.b16 %v472
        %v611 = vunpack.c.h.b16 %v472
        %v612 = vunpack.c.l.b16 %v473
        %v613 = vunpack.c.h.b16 %v473
        %v614 = vunpack.c.l.b16 %v474
        %v615 = vunpack.c.h.b16 %v474
        %v616 = vunpack.c.l.b16 %v475
        %v617 = vunpack.c.h.b16 %v475
        %v618 = vunpack.c.l.b16 %v476
        %v619 = vunpack.c.h.b16 %v476
        %v620 = vunpack.c.l.b16 %v477
        %v621 = vunpack.c.h.b16 %v477
        %v622 = vunpack.c.l.b16 %v478
        %v623 = vunpack.c.h.b16 %v478
        %v624 = vunpack.c.l.b16 %v479
        %v625 = vunpack.c.h.b16 %v479
        %v626 = vunpack.c.l.b16 %v480
        %v627 = vunpack.c.h.b16 %v480
        %v628 = vunpack.c.l.b16 %v481
        %v629 = vunpack.c.h.b16 %v481
        %v630 = vunpack.c.l.b16 %v482
        %v631 = vunpack.c.h.b16 %v482
        %v632 = vunpack.c.l.b16 %v483
        %v633 = vunpack.c.h.b16 %v483
        %v634 = vunpack.c.l.b16 %v484
        %v635 = vunpack.c.h.b16 %v484
        %v636 = vunpack.c.l.b16 %v485
        %v637 = vunpack.c.h.b16 %v485
        %v638 = vunpack.c.l.b16 %v486
        %v639 = vunpack.c.h.b16 %v486
        %v640 = vunpack.c.l.b16 %v487
        %v641 = vunpack.c.h.b16 %v487
        %v642 = vunpack.c.l.b16 %v488
        %v643 = vunpack.c.h.b16 %v488
        %v644 = vunpack.c.l.b16 %v489
        %v645 = vunpack.c.h.b16 %v489
        %v646 = vunpack.c.l.b16 %v490
        %v647 = vunpack.c.h.b16 %v490
        %v648 = vunpack.c.l.b16 %v491
        %v649 = vunpack.c.h.b16 %v491
        %v650 = vunpack.c.l.b16 %v492
        %v651 = vunpack.c.h.b16 %v492
        %v652 = vunpack.c.l.b16 %v493
        %v653 = vunpack.c.h.b16 %v493
        %v654 = vunpack.c.l.b16 %v494
        %v655 = vunpack.c.h.b16 %v494
        %v656 = vunpack.c.l.b16 %v495
        %v657 = vunpack.c.h.b16 %v495
        %v658 = vunpack.c.l.b16 %v496
        %v659 = vunpack.c.h.b16 %v496
        %v660 = vunpack.c.l.b16 %v497
        %v661 = vunpack.c.h.b16 %v497
        %v662 = vunpack.c.l.b16 %v498
        %v663 = vunpack.c.h.b16 %v498
        %v664 = vunpack.c.l.b16 %v499
        %v665 = vunpack.c.h.b16 %v499
        %v666 = vunpack.c.l.b16 %v500
        %v667 = vunpack.c.h.b16 %v500
        %v668 = vunpack.c.l.b16 %v501
        %v669 = vunpack.c.h.b16 %v501
        %v670 = vunpack.c.l.b16 %v502
        %v671 = vunpack.c.h.b16 %v502
        %v672 = vunpack.c.l.b16 %v503
        %v673 = vunpack.c.h.b16 %v503
        %v674 = vunpack.c.l.b16 %v504
        %v675 = vunpack.c.h.b16 %v504
        %v676 = vunpack.c.l.b16 %v505
        %v677 = vunpack.c.h.b16 %v505
        %v678 = vunpack.c.l.b16 %v506
        %v679 = vunpack.c.h.b16 %v506
        %v680 = vunpack.c.l.b16 %v507
        %v681 = vunpack.c.h.b16 %v507
        %v682 = vunpack.c.l.b16 %v508
        %v683 = vunpack.c.h.b16 %v508
        %v684 = vunpack.c.l.b16 %v509
        %v685 = vunpack.c.h.b16 %v509
        %v686 = vunpack.c.l.b16 %v510
        %v687 = vunpack.c.h.b16 %v510
        %v688 = vunpack.c.l.b16 %v511
        %v689 = vunpack.c.h.b16 %v511
        %v690 = vunpack.c.l.b16 %v512
        %v691 = vunpack.c.h.b16 %v512
        %v692 = vunpack.c.l.b16 %v513
        %v693 = vunpack.c.h.b16 %v513
        %v694 = vunpack.c.l.b16 %v514
        %v695 = vunpack.c.h.b16 %v514
        %v696 = vunpack.c.l.b16 %v515
        %v697 = vunpack.c.h.b16 %v515
        %v698 = vunpack.c.l.b16 %v516
        %v699 = vunpack.c.h.b16 %v516
        %v700 = vunpack.c.l.b16 %v517
        %v701 = vunpack.c.h.b16 %v517
        %v702 = vunpack.c.l.b16 %v518
        %v703 = vunpack.c.h.b16 %v518
        %v704 = vunpack.c.l.b16 %v519
        %v705 = vunpack.c.h.b16 %v519
        %v706 = vunpack.c.l.b16 %v520
        %v707 = vunpack.c.h.b16 %v520
        %v708 = vunpack.c.l.b16 %v521
        %v709 = vunpack.c.h.b16 %v521
        %v710 = vunpack.c.l.b16 %v522
        %v711 = vunpack.c.h.b16 %v522
        %v712 = vunpack.c.l.b16 %v523
        %v713 = vunpack.c.h.b16 %v523
        %v714 = vunpack.c.l.b16 %v524
        %v715 = vunpack.c.h.b16 %v524
        %v716 = vunpack.c.l.b16 %v525
        %v717 = vunpack.c.h.b16 %v525
        %v718 = vpack.c.b16 %v598, %v590
        %v719 = vpack.c.b16 %v599, %v591
        %v720 = vpack.c.b16 %v600, %v592
        %v721 = vpack.c.b16 %v601, %v593
        %v722 = vpack.c.b16 %v602, %v594
        %v723 = vpack.c.b16 %v603, %v595
        %v724 = vpack.c.b16 %v604, %v596
        %v725 = vpack.c.b16 %v605, %v597
        %v726 = vpack.c.b16 %v614, %v606
        %v727 = vpack.c.b16 %v615, %v607
        %v728 = vpack.c.b16 %v616, %v608
        %v729 = vpack.c.b16 %v617, %v609
        %v730 = vpack.c.b16 %v618, %v610
        %v731 = vpack.c.b16 %v619, %v611
        %v732 = vpack.c.b16 %v620, %v612
        %v733 = vpack.c.b16 %v621, %v613
        %v734 = vpack.c.b16 %v630, %v622
        %v735 = vpack.c.b16 %v631, %v623
        %v736 = vpack.c.b16 %v632, %v624
        %v737 = vpack.c.b16 %v633, %v625
        %v738 = vpack.c.b16 %v634, %v626
        %v739 = vpack.c.b16 %v635, %v627
        %v740 = vpack.c.b16 %v636, %v628
        %v741 = vpack.c.b16 %v637, %v629
        %v742 = vpack.c.b16 %v646, %v638
        %v743 = vpack.c.b16 %v647, %v639
        %v744 = vpack.c.b16 %v648, %v640
        %v745 = vpack.c.b16 %v649, %v641
        %v746 = vpack.c.b16 %v650, %v642
        %v747 = vpack.c.b16 %v651, %v643
        %v748 = vpack.c.b16 %v652, %v644
        %v749 = vpack.c.b16 %v653, %v645
        %v750 = vpack.c.b16 %v662, %v654
        %v751 = vpack.c.b16 %v663, %v655
        %v752 = vpack.c.b16 %v664, %v656
        %v753 = vpack.c.b16 %v665, %v657
        %v754 = vpack.c.b16 %v666, %v658
        %v755 = vpack.c.b16 %v667, %v659
        %v756 = vpack.c.b16 %v668, %v660
        %v757 = vpack.c.b16 %v669, %v661
        %v758 = vpack.c.b16 %v678, %v670
        %v759 = vpack.c.b16 %v679, %v671
        %v760 = vpack.c.b16 %v680, %v672
        %v761 = vpack.c.b16 %v681, %v673
        %v762 = vpack.c.b16 %v682, %v674
        %v763 = vpack.c.b16 %v683, %v675
        %v764 = vpack.c.b16 %v684, %v676
        %v765 = vpack.c.b16 %v685, %v677
        %v766 = vpack.c.b16 %v694, %v686
        %v767 = vpack.c.b16 %v695, %v687
        %v768 = vpack.c.b16 %v696, %v688
        %v769 = vpack.c.b16 %v697, %v689
        %v770 = vpack.c.b16 %v698, %v690
        %v771 = vpack.c.b16 %v699, %v691
        %v772 = vpack.c.b16 %v700, %v692
        %v773 = vpack.c.b16 %v701, %v693
        %v774 = vpack.c.b16 %v710, %v702
        %v775 = vpack.c.b16 %v711, %v703
        %v776 = vpack.c.b16 %v712, %v704
        %v777 = vpack.c.b16 %v713, %v705
        %v778 = vpack.c.b16 %v714, %v706
        %v779 = vpack.c.b16 %v715, %v707
        %v780 = vpack.c.b16 %v716, %v708
        %v781 = vpack.c.b16 %v717, %v709
        %846 = vmatprep.subr.bf16.mxu0 %v719
        %847 = vmatpush1.bf16.msra.mxu0 %v718
        %848 = vmatprep.subr.bf16.mxu0 %v727
        %849 = vmatpush1.bf16.msra.mxu0 %v726
        %850 = vmatprep.subr.bf16.mxu0 %v735
        %851 = vmatpush1.bf16.msra.mxu0 %v734
        %852 = vmatprep.subr.bf16.mxu0 %v743
        %853 = vmatpush1.bf16.msra.mxu0 %v742
        %854 = vmatprep.subr.bf16.mxu0 %v751
        %855 = vmatpush1.bf16.msra.mxu0 %v750
        %856 = vmatprep.subr.bf16.mxu0 %v759
        %857 = vmatpush1.bf16.msra.mxu0 %v758
        %858 = vmatprep.subr.bf16.mxu0 %v767
        %859 = vmatpush1.bf16.msra.mxu0 %v766
        %860 = vmatprep.subr.bf16.mxu0 %v775
        %861 = vmatpush1.bf16.msra.mxu0 %v774
        %862 = vmatprep.subr.bf16.mxu0 0
        %863 = vmatpush1.bf16.msra.mxu0 0
        %864 = vmatprep.subr.bf16.mxu0 0
        %865 = vmatpush1.bf16.msra.mxu0 0
        %866 = vmatprep.subr.bf16.mxu0 0
        %867 = vmatpush1.bf16.msra.mxu0 0
        %868 = vmatprep.subr.bf16.mxu0 0
        %869 = vmatpush1.bf16.msra.mxu0 0
        %870 = vmatprep.subr.bf16.mxu0 0
        %871 = vmatpush1.bf16.msra.mxu0 0
        %872 = vmatprep.subr.bf16.mxu0 0
        %873 = vmatpush1.bf16.msra.mxu0 0
        %874 = vmatprep.subr.bf16.mxu0 0
        %875 = vmatpush1.bf16.msra.mxu0 0
        %876 = vmatprep.subr.bf16.mxu0 0
        %877 = vmatpush1.bf16.msra.mxu0 0
        %878 = vmatprep.mubr.bf16.mxu0 0
        %879 = vmatmul.mubr.bf16.gmra.mrb[0].mxu0 %v461
        %v880 = vpop.f32.mrb[0].mxu0
        %v881 = vadd.f32 0.0, %v880
        %v882 = vpop.f32.mrb[0].mxu0
        %v883 = vadd.f32 0.0, %v882
        %v884 = vpop.f32.mrb[0].mxu0
        %v885 = vadd.f32 0.0, %v884
        %v886 = vpop.f32.mrb[0].mxu0
        %v887 = vadd.f32 0.0, %v886
        %888 = vdwg.mxu0
        %889 = vmatprep.subr.bf16.mxu0 %v721
        %890 = vmatpush1.bf16.msra.mxu0 %v720
        %891 = vmatprep.subr.bf16.mxu0 %v729
        %892 = vmatpush1.bf16.msra.mxu0 %v728
        %893 = vmatprep.subr.bf16.mxu0 %v737
        %894 = vmatpush1.bf16.msra.mxu0 %v736
        %895 = vmatprep.subr.bf16.mxu0 %v745
        %896 = vmatpush1.bf16.msra.mxu0 %v744
        %897 = vmatprep.subr.bf16.mxu0 %v753
        %898 = vmatpush1.bf16.msra.mxu0 %v752
        %899 = vmatprep.subr.bf16.mxu0 %v761
        %900 = vmatpush1.bf16.msra.mxu0 %v760
        %901 = vmatprep.subr.bf16.mxu0 %v769
        %902 = vmatpush1.bf16.msra.mxu0 %v768
        %903 = vmatprep.subr.bf16.mxu0 %v777
        %904 = vmatpush1.bf16.msra.mxu0 %v776
        %905 = vmatprep.subr.bf16.mxu0 0
        %906 = vmatpush1.bf16.msra.mxu0 0
        %907 = vmatprep.subr.bf16.mxu0 0
        %908 = vmatpush1.bf16.msra.mxu0 0
        %909 = vmatprep.subr.bf16.mxu0 0
        %910 = vmatpush1.bf16.msra.mxu0 0
        %911 = vmatprep.subr.bf16.mxu0 0
        %912 = vmatpush1.bf16.msra.mxu0 0
        %913 = vmatprep.subr.bf16.mxu0 0
        %914 = vmatpush1.bf16.msra.mxu0 0
        %915 = vmatprep.subr.bf16.mxu0 0
        %916 = vmatpush1.bf16.msra.mxu0 0
        %917 = vmatprep.subr.bf16.mxu0 0
        %918 = vmatpush1.bf16.msra.mxu0 0
        %919 = vmatprep.subr.bf16.mxu0 0
        %920 = vmatpush1.bf16.msra.mxu0 0
        %921 = vmatprep.mubr.bf16.mxu0 0
        %922 = vmatmul.mubr.bf16.gmra.mrb[0].mxu0 %v461
        %v923 = vpop.f32.mrb[0].mxu0
        %v924 = vadd.f32 0.0, %v923
        %v925 = vpop.f32.mrb[0].mxu0
        %v926 = vadd.f32 0.0, %v925
        %v927 = vpop.f32.mrb[0].mxu0
        %v928 = vadd.f32 0.0, %v927
        %v929 = vpop.f32.mrb[0].mxu0
        %v930 = vadd.f32 0.0, %v929
        %931 = vdwg.mxu0
        %932 = vmatprep.subr.bf16.mxu0 %v723
        %933 = vmatpush1.bf16.msra.mxu0 %v722
        %934 = vmatprep.subr.bf16.mxu0 %v731
        %935 = vmatpush1.bf16.msra.mxu0 %v730
        %936 = vmatprep.subr.bf16.mxu0 %v739
        %937 = vmatpush1.bf16.msra.mxu0 %v738
        %938 = vmatprep.subr.bf16.mxu0 %v747
        %939 = vmatpush1.bf16.msra.mxu0 %v746
        %940 = vmatprep.subr.bf16.mxu0 %v755
        %941 = vmatpush1.bf16.msra.mxu0 %v754
        %942 = vmatprep.subr.bf16.mxu0 %v763
        %943 = vmatpush1.bf16.msra.mxu0 %v762
        %944 = vmatprep.subr.bf16.mxu0 %v771
        %945 = vmatpush1.bf16.msra.mxu0 %v770
        %946 = vmatprep.subr.bf16.mxu0 %v779
        %947 = vmatpush1.bf16.msra.mxu0 %v778
        %948 = vmatprep.subr.bf16.mxu0 0
        %949 = vmatpush1.bf16.msra.mxu0 0
        %950 = vmatprep.subr.bf16.mxu0 0
        %951 = vmatpush1.bf16.msra.mxu0 0
        %952 = vmatprep.subr.bf16.mxu0 0
        %953 = vmatpush1.bf16.msra.mxu0 0
        %954 = vmatprep.subr.bf16.mxu0 0
        %955 = vmatpush1.bf16.msra.mxu0 0
        %956 = vmatprep.subr.bf16.mxu0 0
        %957 = vmatpush1.bf16.msra.mxu0 0
        %958 = vmatprep.subr.bf16.mxu0 0
        %959 = vmatpush1.bf16.msra.mxu0 0
        %960 = vmatprep.subr.bf16.mxu0 0
        %961 = vmatpush1.bf16.msra.mxu0 0
        %962 = vmatprep.subr.bf16.mxu0 0
        %963 = vmatpush1.bf16.msra.mxu0 0
        %964 = vmatprep.mubr.bf16.mxu0 0
        %965 = vmatmul.mubr.bf16.gmra.mrb[0].mxu0 %v461
        %v966 = vpop.f32.mrb[0].mxu0
        %v967 = vadd.f32 0.0, %v966
        %v968 = vpop.f32.mrb[0].mxu0
        %v969 = vadd.f32 0.0, %v968
        %v970 = vpop.f32.mrb[0].mxu0
        %v971 = vadd.f32 0.0, %v970
        %v972 = vpop.f32.mrb[0].mxu0
        %v973 = vadd.f32 0.0, %v972
        %974 = vdwg.mxu0
        %975 = vmatprep.subr.bf16.mxu0 %v725
        %976 = vmatpush1.bf16.msra.mxu0 %v724
        %977 = vmatprep.subr.bf16.mxu0 %v733
        %978 = vmatpush1.bf16.msra.mxu0 %v732
        %979 = vmatprep.subr.bf16.mxu0 %v741
        %980 = vmatpush1.bf16.msra.mxu0 %v740
        %981 = vmatprep.subr.bf16.mxu0 %v749
        %982 = vmatpush1.bf16.msra.mxu0 %v748
        %983 = vmatprep.subr.bf16.mxu0 %v757
        %984 = vmatpush1.bf16.msra.mxu0 %v756
        %985 = vmatprep.subr.bf16.mxu0 %v765
        %986 = vmatpush1.bf16.msra.mxu0 %v764
        %987 = vmatprep.subr.bf16.mxu0 %v773
        %988 = vmatpush1.bf16.msra.mxu0 %v772
        %989 = vmatprep.subr.bf16.mxu0 %v781
        %990 = vmatpush1.bf16.msra.mxu0 %v780
        %991 = vmatprep.subr.bf16.mxu0 0
        %992 = vmatpush1.bf16.msra.mxu0 0
        %993 = vmatprep.subr.bf16.mxu0 0
        %994 = vmatpush1.bf16.msra.mxu0 0
        %995 = vmatprep.subr.bf16.mxu0 0
        %996 = vmatpush1.bf16.msra.mxu0 0
        %997 = vmatprep.subr.bf16.mxu0 0
        %998 = vmatpush1.bf16.msra.mxu0 0
        %999 = vmatprep.subr.bf16.mxu0 0
        %1000 = vmatpush1.bf16.msra.mxu0 0
        %1001 = vmatprep.subr.bf16.mxu0 0
        %1002 = vmatpush1.bf16.msra.mxu0 0
        %1003 = vmatprep.subr.bf16.mxu0 0
        %1004 = vmatpush1.bf16.msra.mxu0 0
        %1005 = vmatprep.subr.bf16.mxu0 0
        %1006 = vmatpush1.bf16.msra.mxu0 0
        %1007 = vmatprep.mubr.bf16.mxu0 0
        %1008 = vmatmul.mubr.bf16.gmra.mrb[0].mxu0 %v461
        %v1009 = vpop.f32.mrb[0].mxu0
        %v1010 = vadd.f32 0.0, %v1009
        %v1011 = vpop.f32.mrb[0].mxu0
        %v1012 = vadd.f32 0.0, %v1011
        %v1013 = vpop.f32.mrb[0].mxu0
        %v1014 = vadd.f32 0.0, %v1013
        %v1015 = vpop.f32.mrb[0].mxu0
        %v1016 = vadd.f32 0.0, %v1015
        %1017 = vdwg.mxu0
        %v1018 = vmax.f32 %v881, %v885
        %v1019 = vrot.slane %v1018, 4
        %v1020 = vmax.f32 %v1018, %v1019
        %v1021 = vrot.slane %v1020, 2
        %v1022 = vmax.f32 %v1020, %v1021
        %v1023 = vrot.slane %v1022, 1
        %v1024 = vmax.f32 %v1022, %v1023
        %v1025 = vmax.f32 %v883, %v887
        %v1026 = vrot.slane %v1025, 4
        %v1027 = vmax.f32 %v1025, %v1026
        %v1028 = vrot.slane %v1027, 2
        %v1029 = vmax.f32 %v1027, %v1028
        %v1030 = vrot.slane %v1029, 1
        %v1031 = vmax.f32 %v1029, %v1030
        %v1032 = vmax.f32 %v924, %v928
        %v1033 = vrot.slane %v1032, 4
        %v1034 = vmax.f32 %v1032, %v1033
        %v1035 = vrot.slane %v1034, 2
        %v1036 = vmax.f32 %v1034, %v1035
        %v1037 = vrot.slane %v1036, 1
        %v1038 = vmax.f32 %v1036, %v1037
        %v1039 = vmax.f32 %v926, %v930
        %v1040 = vrot.slane %v1039, 4
        %v1041 = vmax.f32 %v1039, %v1040
        %v1042 = vrot.slane %v1041, 2
        %v1043 = vmax.f32 %v1041, %v1042
        %v1044 = vrot.slane %v1043, 1
        %v1045 = vmax.f32 %v1043, %v1044
        %v1046 = vmax.f32 %v967, %v971
        %v1047 = vrot.slane %v1046, 4
        %v1048 = vmax.f32 %v1046, %v1047
        %v1049 = vrot.slane %v1048, 2
        %v1050 = vmax.f32 %v1048, %v1049
        %v1051 = vrot.slane %v1050, 1
        %v1052 = vmax.f32 %v1050, %v1051
        %v1053 = vmax.f32 %v969, %v973
        %v1054 = vrot.slane %v1053, 4
        %v1055 = vmax.f32 %v1053, %v1054
        %v1056 = vrot.slane %v1055, 2
        %v1057 = vmax.f32 %v1055, %v1056
        %v1058 = vrot.slane %v1057, 1
        %v1059 = vmax.f32 %v1057, %v1058
        %v1060 = vmax.f32 %v1010, %v1014
        %v1061 = vrot.slane %v1060, 4
        %v1062 = vmax.f32 %v1060, %v1061
        %v1063 = vrot.slane %v1062, 2
        %v1064 = vmax.f32 %v1062, %v1063
        %v1065 = vrot.slane %v1064, 1
        %v1066 = vmax.f32 %v1064, %v1065
        %v1067 = vmax.f32 %v1012, %v1016
        %v1068 = vrot.slane %v1067, 4
        %v1069 = vmax.f32 %v1067, %v1068
        %v1070 = vrot.slane %v1069, 2
        %v1071 = vmax.f32 %v1069, %v1070
        %v1072 = vrot.slane %v1071, 1
        %v1073 = vmax.f32 %v1071, %v1072
        %p1074 = scmp.eq.s32.totalorder %s28, 0
        // Predicated region
        $region49: #{tpu_custom_call.1} parent=43 // pred_check
          %p1075 = pneg %p1074
        $region50: #{tpu_custom_call.1} parent=43 // pred_check_branch
          %1077 = sbr.rel (%p1075) target = $region52
        $region51: #{tpu_custom_call.1} parent=43 // pred_region
          %v1086 = vcombine.low %v1024, %v1031
          %v1087 = vcombine.low %v1038, %v1045
          %v1088 = vcombine.low %v1052, %v1059
          %v1089 = vcombine.low %v1066, %v1073
          %v1091 = vunpack.c.l.s4 1966171168
          %v1092 = vunpack.c.0.s8 %v1091
          %v1093 = vlaneseq
          %v1094 = vshrl.u32 %v1093, 7
          %v1095 = vsub.s32 %v1092, %v1094
          %v1096 = vrot.slane %v1086, %v1095
          %v1098 = vunpack.c.l.s4 1966171168
          %v1099 = vunpack.c.0.s8 %v1098
          %v1100 = vlaneseq
          %v1101 = vshrl.u32 %v1100, 7
          %v1102 = vsub.s32 %v1099, %v1101
          %v1103 = vrot.slane %v1087, %v1102
          %v1105 = vunpack.c.l.s4 1966171168
          %v1106 = vunpack.c.0.s8 %v1105
          %v1107 = vlaneseq
          %v1108 = vshrl.u32 %v1107, 7
          %v1109 = vsub.s32 %v1106, %v1108
          %v1110 = vrot.slane %v1088, %v1109
          %v1112 = vunpack.c.l.s4 1966171168
          %v1113 = vunpack.c.0.s8 %v1112
          %v1114 = vlaneseq
          %v1115 = vshrl.u32 %v1114, 7
          %v1116 = vsub.s32 %v1113, %v1115
          %v1117 = vrot.slane %v1089, %v1116
          %v1118 = vcombine.low %v1096, %v1103
          %v1119 = vcombine.low %v1110, %v1117
          %v1121 = vunpack.c.l.s4 1966171168
          %v1122 = vunpack.c.0.s8 %v1121
          %v1123 = vlaneseq
          %v1124 = vshrl.u32 %v1123, 7
          %v1125 = vsub.s32 %v1122, %v1124
          %v1126 = vrot.slane %v1118, %v1125
          %v1128 = vunpack.c.l.s4 1966171168
          %v1129 = vunpack.c.0.s8 %v1128
          %v1130 = vlaneseq
          %v1131 = vshrl.u32 %v1130, 7
          %v1132 = vsub.s32 %v1129, %v1131
          %v1133 = vrot.slane %v1119, %v1132
          %v1134 = vcombine.low %v1126, %v1133
          %1136 = vst [vmem:[%s296] sm:$0xff] %v1134
        $region52: #{tpu_custom_call.1} parent=43 // pred_fallthru
          _
        %p1137 = scmp.gt.s32.totalorder %s28, 0
        // Predicated region
        $region53: #{tpu_custom_call.1} parent=43 // pred_check
          %p1138 = pneg %p1137
        $region54: #{tpu_custom_call.1} parent=43 // pred_check_branch
          %1140 = sbr.rel (%p1138) target = $region56
        $region55: #{tpu_custom_call.1} parent=43 // pred_region
          %v1141 = vld [vmem:[%s296] sm:$0xff]
          %v1150 = vcombine.low %v1024, %v1031
          %v1151 = vcombine.low %v1038, %v1045
          %v1152 = vcombine.low %v1052, %v1059
          %v1153 = vcombine.low %v1066, %v1073
          %v1155 = vunpack.c.l.s4 1966171168
          %v1156 = vunpack.c.0.s8 %v1155
          %v1157 = vlaneseq
          %v1158 = vshrl.u32 %v1157, 7
          %v1159 = vsub.s32 %v1156, %v1158
          %v1160 = vrot.slane %v1150, %v1159
          %v1162 = vunpack.c.l.s4 1966171168
          %v1163 = vunpack.c.0.s8 %v1162
          %v1164 = vlaneseq
          %v1165 = vshrl.u32 %v1164, 7
          %v1166 = vsub.s32 %v1163, %v1165
          %v1167 = vrot.slane %v1151, %v1166
          %v1169 = vunpack.c.l.s4 1966171168
          %v1170 = vunpack.c.0.s8 %v1169
          %v1171 = vlaneseq
          %v1172 = vshrl.u32 %v1171, 7
          %v1173 = vsub.s32 %v1170, %v1172
          %v1174 = vrot.slane %v1152, %v1173
          %v1176 = vunpack.c.l.s4 1966171168
          %v1177 = vunpack.c.0.s8 %v1176
          %v1178 = vlaneseq
          %v1179 = vshrl.u32 %v1178, 7
          %v1180 = vsub.s32 %v1177, %v1179
          %v1181 = vrot.slane %v1153, %v1180
          %v1182 = vcombine.low %v1160, %v1167
          %v1183 = vcombine.low %v1174, %v1181
          %v1185 = vunpack.c.l.s4 1966171168
          %v1186 = vunpack.c.0.s8 %v1185
          %v1187 = vlaneseq
          %v1188 = vshrl.u32 %v1187, 7
          %v1189 = vsub.s32 %v1186, %v1188
          %v1190 = vrot.slane %v1182, %v1189
          %v1192 = vunpack.c.l.s4 1966171168
          %v1193 = vunpack.c.0.s8 %v1192
          %v1194 = vlaneseq
          %v1195 = vshrl.u32 %v1194, 7
          %v1196 = vsub.s32 %v1193, %v1195
          %v1197 = vrot.slane %v1183, %v1196
          %v1198 = vcombine.low %v1190, %v1197
          %v1200 = vmax.f32 %v1141, %v1198
          %1201 = vst [vmem:[%s296] sm:$0xff] %v1200
        $region56: #{tpu_custom_call.1} parent=43 // pred_fallthru
          _
        %s1202 = sand.u32 %s185, 1
        %s1203 = scalar_lea.sflag [#allocation4], %s1202
        %s1204 = sand.u32 %s185, 1
        %s1205 = smul.addr %s1204, 8
        %s1206 = scalar_lea.vmem [#allocation5], %s1205
        // Predicated region
        $region57: #{tpu_custom_call.1} parent=43 // pred_check
          %p1207 = pneg %p195
        $region58: #{tpu_custom_call.1} parent=43 // pred_check_branch
          %1209 = sbr.rel (%p1207) target = $region60
        $region59: #{tpu_custom_call.1} parent=43 // pred_region
          %s1211 = ssub.s32 128, 128
          %1212 = vsyncadd %s1203, %s1211
          %s1213 = smul.addr %s27, 8
          %s1214 = smul.addr %s26, 8
          %s1215 = sadd.s32 %s1213, %s1214
          %s1216 = smul.addr %s1215, 16
          %s1217 = scalar_lea.hbm %s6, %s1216
          %s1219 = sshll.u32 %s1206, 4
          %s1220 = int_to_ptr.vmem [resolvable:$true] %s1219
          %1222 = dma.vmem_to_hbm [thread:$0]  %s1220, 128, %s1217, %s1203
        $region60: #{tpu_custom_call.1} parent=43 // pred_fallthru
          _
      $region44: #{tpu_custom_call.1} parent=5 // pred_fallthru
        _
      %p1223 = scmp.le.s32.totalorder 2, %s16
      // Predicated region
      $region61: #{tpu_custom_call.1} parent=5 // pred_check
        %p1224 = pneg %p1223
      $region62: #{tpu_custom_call.1} parent=5 // pred_check_branch
        %1226 = sbr.rel (%p1224) target = $region64
      $region63: #{tpu_custom_call.1} parent=5 // pred_region
        %s1227 = ssub.s32 %s16, 2
        // Predicated region
        $region65: #{tpu_custom_call.1} parent=63 // pred_check
          %p1228 = pneg %p201
        $region66: #{tpu_custom_call.1} parent=63 // pred_check_branch
          %1230 = sbr.rel (%p1228) target = $region68
        $region67: #{tpu_custom_call.1} parent=63 // pred_region
          %s1231 = sand.u32 %s186, 1
          %s1232 = scalar_lea.sflag [#allocation4], %s1231
          %s1233 = sand.u32 %s186, 1
          %s1234 = smul.addr %s1233, 8
          %s1235 = scalar_lea.vmem [#allocation5], %s1234
          %1236 = dma.done %s1232, 128
        $region68: #{tpu_custom_call.1} parent=63 // pred_fallthru
          _
      $region64: #{tpu_custom_call.1} parent=5 // pred_fallthru
        _
    $region6: #{tpu_custom_call.1} parent=1 // loop_footer
      %s20 = sadd.s32 1, %s16
    $region7: #{tpu_custom_call.1} parent=1 // loop_footer_branch
      %15 = sbr.rel target = $region3
    $region8: #{tpu_custom_call.1} parent=1 // loop_exit
      _
    %1237 = vsyncpa [#allocation3], 1
    %s1238 = scalar_lea.sflag [#allocation3], 1
    %1239 = vsyncpa %s1238, 1
    %1240 = vsyncpa [#allocation4], 1
    %s1241 = scalar_lea.sflag [#allocation4], 1
    %1242 = vsyncpa %s1241, 1

</llo_original>
